<compile_context>
chip_gen: v5e
topology: v5e:2x2
jax: 0.10.0
libtpu: 0.0.40
codegen_flags: <defaults>
</compile_context>

<pallas_src>
import jax
import jax.numpy as jnp
from jax.experimental import pallas as pl
from jax.experimental.pallas import tpu as pltpu
from typing import NamedTuple


def _round_up(x, m):
    return ((x + m - 1) // m) * m


def _cdiv(a, b):
    return (a + b - 1) // b


_TM_CANDIDATES = (1024, 768, 512, 384, 256, 192, 128, 96, 64, 48, 32, 16)


def _tpu_generation_and_vmem():
    """Returns (tpu_generation, physical VMEM bytes per TensorCore)."""
    kind = ""
    try:
        kind = jax.devices()[0].device_kind.lower()
    except Exception:
        pass
    reported = None
    try:
        reported = int(pltpu.get_tpu_info().vmem_capacity_bytes)
    except Exception:
        reported = None
    if "v7" in kind:
        gen, default = 7, 64 * 2**20      # 64 MiB per TensorCore on v7x
    elif "v6" in kind:
        gen, default = 6, 128 * 2**20
    elif "v5" in kind:
        gen, default = 5, 128 * 2**20
    elif "v4" in kind:
        gen, default = 4, 128 * 2**20
    else:
        gen, default = 0, 64 * 2**20      # unknown: be conservative (v7x-like)
    vmem = min(reported, default) if reported else default
    return gen, vmem


def _footprint_bytes(tm, th, dim_p, out_bytes):
    """Estimated VMEM footprint of one grid step (double-buffered streams)."""
    return (
        2 * tm * dim_p * 2          # x tile (bf16, 2 buffers)
        + 2 * 2 * dim_p * th * 2    # W1a + W1b tiles (bf16, 2 buffers each)
        + 2 * th * dim_p * 2        # W2 tile (bf16, 2 buffers)
        + 2 * 2 * 8 * th * 4        # b1a + b1b tiles (f32, sublane-padded)
        + 2 * 8 * dim_p * 4         # b2 (f32, sublane-padded)
        + 2 * tm * dim_p * out_bytes  # output tile (2 buffers)
        + tm * dim_p * 4            # f32 accumulator scratch
    )


class GLUPlan(NamedTuple):
    dim: int
    dim_p: int
    H: int
    H_p: int
    th: int
    tm: int
    gen: int
    vmem_budget: int


def make_glu_plan(dim, *, max_rows=2048, out_bytes=4):
    """One-time tiling plan for a given model dim (generation aware)."""
    gen, vmem_phys = _tpu_generation_and_vmem()
    frac = 0.80 if gen in (0, 7) else 0.82    # leave headroom for Mosaic scratch
    budget = int(vmem_phys * frac)

    dim_p = _round_up(dim, 128)
    H = 4 * dim
    H128 = _round_up(H, 128)
    # th multiples of 256 on 256-wide MXUs (v6e/v7x/unknown); 384 OK on v4/v5.
    th_base = (512, 384, 256, 128) if gen in (4, 5) else (512, 256, 128)
    th_cands = [t for t in th_base if H128 % t == 0] or [128]

    tm_cap = max(16, min(1024, _round_up(max_rows, 16)))
    tm_cands = [t for t in _TM_CANDIDATES if t <= tm_cap] or [16]

    # Maximize tm first (it sets FLOPs per streamed weight byte), then th.
    tm_sel, th_sel = tm_cands[-1], th_cands[-1]
    done = False
    for tm in tm_cands:
        for th in th_cands:
            if _footprint_bytes(tm, th, dim_p, out_bytes) <= budget:
                tm_sel, th_sel = tm, th
                done = True
                break
        if done:
            break

    return GLUPlan(dim=dim, dim_p=dim_p, H=H, H_p=_round_up(H, th_sel),
                   th=th_sel, tm=tm_sel, gen=gen, vmem_budget=budget)


def prepare_glu_params(plan, w1, b1, w2, b2):
    """One-time weight preprocessing: split GLU halves, pad, cast to bf16.

    Call once and cache; do NOT call per forward pass.
    """
    dim, dim_p, H, H_p = plan.dim, plan.dim_p, plan.H, plan.H_p
    assert w1.shape == (dim, 8 * dim) and b1.shape == (8 * dim,)
    assert w2.shape == (H, dim) and b2.shape == (dim,)

    def pad2(a, r, c, dtype):
        return jnp.pad(a, ((0, r - a.shape[0]), (0, c - a.shape[1]))).astype(dtype)

    w1a, w1b = w1[:, :H], w1[:, H:]
    b1a, b1b = b1[:H], b1[H:]
    return (
        pad2(w1a, dim_p, H_p, jnp.bfloat16),
        pad2(w1b, dim_p, H_p, jnp.bfloat16),
        pad2(b1a.reshape(1, H), 1, H_p, jnp.float32),
        pad2(b1b.reshape(1, H), 1, H_p, jnp.float32),
        pad2(w2, H_p, dim_p, jnp.bfloat16),
        pad2(b2.reshape(1, dim), 1, dim_p, jnp.float32),
    )


def glu_ffn_kernel(x_ref, w1a_ref, w1b_ref, b1a_ref, b1b_ref, w2_ref, b2_ref,
                   o_ref, acc_ref):
    # x_ref   : (tm, dim_p)   bf16
    # w1a_ref : (dim_p, th)   bf16   W1[:, :4*dim] column tile ("a" half)
    # w1b_ref : (dim_p, th)   bf16   W1[:, 4*dim:] column tile ("b" half)
    # b1a_ref : (1, th)       f32
    # b1b_ref : (1, th)       f32
    # w2_ref  : (th, dim_p)   bf16   W2 row tile (matches hidden tile)
    # b2_ref  : (1, dim_p)    f32
    # o_ref   : (tm, dim_p)
    # acc_ref : (tm, dim_p)   f32 scratch, carried across the hidden axis
    h = pl.program_id(1)

    @pl.when(h == 0)
    def _():
        # Fold the output bias into the accumulator init (saves epilogue add).
        acc_ref[...] = jnp.broadcast_to(b2_ref[...], acc_ref.shape)

    x = x_ref[...]
    a = jnp.dot(x, w1a_ref[...], preferred_element_type=jnp.float32) + b1a_ref[...]
    b = jnp.dot(x, w1b_ref[...], preferred_element_type=jnp.float32) + b1b_ref[...]
    g = a * jax.nn.sigmoid(b)  # f32 gate; sigmoid runs on the EUP (free slot)
    # TODO(synk): dropout is eval-mode identity here; training mode would use
    # pltpu.prng_seed + pltpu.stateful_bernoulli on `g`.
    acc_ref[...] += jnp.dot(g.astype(w2_ref.dtype), w2_ref[...],
                            preferred_element_type=jnp.float32)

    @pl.when(h == pl.num_programs(1) - 1)
    def _():
        o_ref[...] = acc_ref[...].astype(o_ref.dtype)


def glu_feedforward(x, plan, params):
    """x: (batch, seq, dim). params: output of prepare_glu_params(plan, ...)."""
    w1a_p, w1b_p, b1a_p, b1b_p, w2_p, b2_p = params
    batch, seq, dim = x.shape
    assert dim == plan.dim
    M = batch * seq
    dim_p, H_p, th = plan.dim_p, plan.H_p, plan.th
    out_bytes = jnp.dtype(x.dtype).itemsize

    # Row tile: use the planned tm, clamped to the (16-padded) row count,
    # and shrunk if the actual output dtype blows the VMEM budget.
    tm = min(plan.tm, _round_up(M, 16))
    if _footprint_bytes(tm, th, dim_p, out_bytes) > plan.vmem_budget:
        for cand in _TM_CANDIDATES:
            if cand < tm and _footprint_bytes(cand, th, dim_p, out_bytes) <= plan.vmem_budget:
                tm = cand
                break

    # v7x: both TensorCores share the "parallel" row axis -> prefer an even
    # number of row tiles when there is more than one.
    n_rows = _cdiv(M, tm)
    if plan.gen == 7 and n_rows > 1 and n_rows % 2 == 1:
        tm_even = max(16, _round_up(_cdiv(M, n_rows + 1), 16))
        if _cdiv(M, tm_even) % 2 == 0:
            tm = tm_even

    M_p = _round_up(M, tm)
    x_p = jnp.pad(x.reshape(M, dim),
                  ((0, M_p - M), (0, dim_p - dim))).astype(jnp.bfloat16)

    grid = (M_p // tm, H_p // th)
    n_row_tiles = grid[0]

    footprint = _footprint_bytes(tm, th, dim_p, out_bytes)
    vmem_limit = int(min(plan.vmem_budget,
                         max(int(footprint * 1.4), 32 * 2**20)))

    # Weights are re-streamed once per row-tile pass.
    weight_bytes = ((w1a_p.size + w1b_p.size + w2_p.size) * 2
                    + (b1a_p.size + b1b_p.size + b2_p.size) * 4)
    cost = pl.CostEstimate(
        flops=6 * M_p * dim_p * H_p,
        transcendentals=M_p * H_p,
        bytes_accessed=(x_p.size * 2
                        + n_row_tiles * weight_bytes
                        + M_p * dim_p * out_bytes),
    )

    out = pl.pallas_call(
        glu_ffn_kernel,
        out_shape=jax.ShapeDtypeStruct((M_p, dim_p), x.dtype),
        grid_spec=pltpu.PrefetchScalarGridSpec(
            num_scalar_prefetch=0,
            grid=grid,
            in_specs=[
                pl.BlockSpec((tm, dim_p), lambda i, h: (i, 0)),   # x row tile
                pl.BlockSpec((dim_p, th), lambda i, h: (0, h)),   # W1a col tile
                pl.BlockSpec((dim_p, th), lambda i, h: (0, h)),   # W1b col tile
                pl.BlockSpec((1, th), lambda i, h: (0, h)),       # b1a tile
                pl.BlockSpec((1, th), lambda i, h: (0, h)),       # b1b tile
                pl.BlockSpec((th, dim_p), lambda i, h: (h, 0)),   # W2 row tile
                pl.BlockSpec((1, dim_p), lambda i, h: (0, 0)),    # b2 (invariant)
            ],
            out_specs=pl.BlockSpec((tm, dim_p), lambda i, h: (i, 0)),
            scratch_shapes=[pltpu.VMEM((tm, dim_p), jnp.float32)],
        ),
        compiler_params=pltpu.CompilerParams(
            dimension_semantics=("parallel", "arbitrary"),
            vmem_limit_bytes=vmem_limit,
        ),
        cost_estimate=cost,
    )(x_p, w1a_p, w1b_p, b1a_p, b1b_p, w2_p, b2_p)

    return out[:M, :dim].reshape(batch, seq, dim)


def init_params(key, dim):
    """Deterministic init mimicking torch.nn.Linear (uniform +-1/sqrt(fan_in))."""
    k1, k2, k3, k4 = jax.random.split(key, 4)
    bound1 = 1.0 / (dim ** 0.5)
    bound2 = 1.0 / ((4 * dim) ** 0.5)
    # Stored already transposed vs. PyTorch: (in_features, out_features).
    w1 = jax.random.uniform(k1, (dim, 8 * dim), jnp.float32, -bound1, bound1)
    b1 = jax.random.uniform(k2, (8 * dim,), jnp.float32, -bound1, bound1)
    w2 = jax.random.uniform(k3, (4 * dim, dim), jnp.float32, -bound2, bound2)
    b2 = jax.random.uniform(k4, (dim,), jnp.float32, -bound2, bound2)
    return w1, b1, w2, b2


if __name__ == "__main__":
    key = jax.random.PRNGKey(0)
    kx, kp = jax.random.split(key)

    batch, seq, dim = 2, 8, 32
    x = jax.random.normal(kx, (batch, seq, dim), jnp.float32)
    w1, b1, w2, b2 = init_params(kp, dim)

    # One-time plan + weight preprocessing (hoisted out of the hot path).
    plan = make_glu_plan(dim, max_rows=batch * seq)
    params = jax.block_until_ready(prepare_glu_params(plan, w1, b1, w2, b2))

    out = glu_feedforward(x, plan, params)
    out = jax.block_until_ready(out)

    # Pure-JAX reference with the same bf16 MXU operands / f32 accumulation.
    xb = x.reshape(-1, dim).astype(jnp.bfloat16)
    h = jnp.dot(xb, w1.astype(jnp.bfloat16),
                preferred_element_type=jnp.float32) + b1
    a, bg = jnp.split(h, 2, axis=-1)
    g = a * jax.nn.sigmoid(bg)
    ref = jnp.dot(g.astype(jnp.bfloat16), w2.astype(jnp.bfloat16),
                  preferred_element_type=jnp.float32) + b2
    ref = ref.reshape(batch, seq, dim)

    assert out.shape == (batch, seq, dim)
    assert jnp.allclose(out, ref, atol=5e-3, rtol=5e-3), float(
        jnp.max(jnp.abs(out - ref)))

    print("KERNEL_OK")
</pallas_src>

<mosaic_0001>
module attributes {stable_mosaic.version = 11 : i64} {
  func.func @glu_ffn_kernel(%arg0: i32, %arg1: i32, %arg2: memref<16x128xbf16, #tpu.memory_space<vmem>>, %arg3: memref<128x128xbf16, #tpu.memory_space<vmem>>, %arg4: memref<128x128xbf16, #tpu.memory_space<vmem>>, %arg5: memref<1x128xf32, #tpu.memory_space<vmem>>, %arg6: memref<1x128xf32, #tpu.memory_space<vmem>>, %arg7: memref<128x128xbf16, #tpu.memory_space<vmem>>, %arg8: memref<1x128xf32, #tpu.memory_space<vmem>>, %arg9: memref<16x128xf32, #tpu.memory_space<vmem>>, %arg10: memref<16x128xf32, #tpu.memory_space<vmem>>) attributes {dimension_semantics = [#tpu.dimension_semantics<parallel>, #tpu.dimension_semantics<arbitrary>], iteration_bounds = array<i64: 1, 1>, scalar_prefetch = 0 : i64, scratch_operands = 1 : i64, tpu.core_type = #tpu.core_type<tc>, window_params = [{transform_indices = @transform_0, window_bounds = array<i64: 16, 128>}, {transform_indices = @transform_1, window_bounds = array<i64: 128, 128>}, {transform_indices = @transform_2, window_bounds = array<i64: 128, 128>}, {transform_indices = @transform_3, window_bounds = array<i64: 1, 128>}, {transform_indices = @transform_4, window_bounds = array<i64: 1, 128>}, {transform_indices = @transform_5, window_bounds = array<i64: 128, 128>}, {pipeline_mode = #tpu.pipeline_mode<synchronous>, transform_indices = @transform_6, window_bounds = array<i64: 1, 128>}, {transform_indices = @transform_7, window_bounds = array<i64: 16, 128>}]} {
    %c0_i32 = arith.constant 0 : i32
    %0 = arith.cmpi eq, %arg1, %c0_i32 : i32
    %1 = arith.extui %0 : i1 to i32
    %c0_i32_0 = arith.constant 0 : i32
    %2 = arith.cmpi ne, %1, %c0_i32_0 : i32
    scf.if %2 {
      %c0_21 = arith.constant 0 : index
      %c0_22 = arith.constant 0 : index
      %29 = vector.load %arg8[%c0_21, %c0_22] : memref<1x128xf32, #tpu.memory_space<vmem>>, vector<1x128xf32>
      %30 = vector.shape_cast %29 : vector<1x128xf32> to vector<1x128xf32>
      %31 = vector.broadcast %30 : vector<1x128xf32> to vector<16x128xf32>
      %c0_23 = arith.constant 0 : index
      %c0_24 = arith.constant 0 : index
      %32 = vector.load %arg10[%c0_23, %c0_24] : memref<16x128xf32, #tpu.memory_space<vmem>>, vector<16x128xf32>
      tpu.vector_store %arg10[%c0_23, %c0_24], %31 {strides = array<i32>} : memref<16x128xf32, #tpu.memory_space<vmem>>, vector<16x128xf32>,
    } else {
    }
    %c0 = arith.constant 0 : index
    %c0_1 = arith.constant 0 : index
    %3 = vector.load %arg2[%c0, %c0_1] : memref<16x128xbf16, #tpu.memory_space<vmem>>, vector<16x128xbf16>
    %c0_2 = arith.constant 0 : index
    %c0_3 = arith.constant 0 : index
    %4 = vector.load %arg3[%c0_2, %c0_3] : memref<128x128xbf16, #tpu.memory_space<vmem>>, vector<128x128xbf16>
    %cst = arith.constant dense<0.000000e+00> : vector<16x128xf32>
    %5 = tpu.matmul %3, %4, %cst {dimension_numbers = #tpu.dot_dimension_numbers<[1], [0], [0], [1], [0, 0, 1, 1], [], []>} : vector<16x128xbf16>, vector<128x128xbf16>, vector<16x128xf32> -> vector<16x128xf32>
    %c0_4 = arith.constant 0 : index
    %c0_5 = arith.constant 0 : index
    %6 = vector.load %arg5[%c0_4, %c0_5] : memref<1x128xf32, #tpu.memory_space<vmem>>, vector<1x128xf32>
    %7 = vector.broadcast %6 : vector<1x128xf32> to vector<16x128xf32>
    %8 = arith.addf %5, %7 : vector<16x128xf32>
    %c0_6 = arith.constant 0 : index
    %c0_7 = arith.constant 0 : index
    %9 = vector.load %arg4[%c0_6, %c0_7] : memref<128x128xbf16, #tpu.memory_space<vmem>>, vector<128x128xbf16>
    %cst_8 = arith.constant dense<0.000000e+00> : vector<16x128xf32>
    %10 = tpu.matmul %3, %9, %cst_8 {dimension_numbers = #tpu.dot_dimension_numbers<[1], [0], [0], [1], [0, 0, 1, 1], [], []>} : vector<16x128xbf16>, vector<128x128xbf16>, vector<16x128xf32> -> vector<16x128xf32>
    %c0_9 = arith.constant 0 : index
    %c0_10 = arith.constant 0 : index
    %11 = vector.load %arg6[%c0_9, %c0_10] : memref<1x128xf32, #tpu.memory_space<vmem>>, vector<1x128xf32>
    %12 = vector.broadcast %11 : vector<1x128xf32> to vector<16x128xf32>
    %13 = arith.addf %10, %12 : vector<16x128xf32>
    %14 = arith.negf %13 : vector<16x128xf32>
    %15 = math.exp %14 : vector<16x128xf32>
    %cst_11 = arith.constant 1.000000e+00 : f32
    %16 = vector.broadcast %cst_11 : f32 to vector<16x128xf32>
    %17 = arith.addf %16, %15 : vector<16x128xf32>
    %18 = arith.divf %16, %17 : vector<16x128xf32>
    %19 = arith.mulf %8, %18 : vector<16x128xf32>
    %c0_12 = arith.constant 0 : index
    %c0_13 = arith.constant 0 : index
    %20 = vector.load %arg10[%c0_12, %c0_13] : memref<16x128xf32, #tpu.memory_space<vmem>>, vector<16x128xf32>
    %21 = arith.truncf %19 : vector<16x128xf32> to vector<16x128xbf16>
    %c0_14 = arith.constant 0 : index
    %c0_15 = arith.constant 0 : index
    %22 = vector.load %arg7[%c0_14, %c0_15] : memref<128x128xbf16, #tpu.memory_space<vmem>>, vector<128x128xbf16>
    %cst_16 = arith.constant dense<0.000000e+00> : vector<16x128xf32>
    %23 = tpu.matmul %21, %22, %cst_16 {dimension_numbers = #tpu.dot_dimension_numbers<[1], [0], [0], [1], [0, 0, 1, 1], [], []>} : vector<16x128xbf16>, vector<128x128xbf16>, vector<16x128xf32> -> vector<16x128xf32>
    %24 = arith.addf %20, %23 : vector<16x128xf32>
    %c0_17 = arith.constant 0 : index
    %c0_18 = arith.constant 0 : index
    %25 = vector.load %arg10[%c0_17, %c0_18] : memref<16x128xf32, #tpu.memory_space<vmem>>, vector<16x128xf32>
    tpu.vector_store %arg10[%c0_17, %c0_18], %24 {strides = array<i32>} : memref<16x128xf32, #tpu.memory_space<vmem>>, vector<16x128xf32>,
    %c0_i32_19 = arith.constant 0 : i32
    %26 = arith.cmpi eq, %arg1, %c0_i32_19 : i32
    %27 = arith.extui %26 : i1 to i32
    %c0_i32_20 = arith.constant 0 : i32
    %28 = arith.cmpi ne, %27, %c0_i32_20 : i32
    scf.if %28 {
      %c0_21 = arith.constant 0 : index
      %c0_22 = arith.constant 0 : index
      %29 = vector.load %arg10[%c0_21, %c0_22] : memref<16x128xf32, #tpu.memory_space<vmem>>, vector<16x128xf32>
      %c0_23 = arith.constant 0 : index
      %c0_24 = arith.constant 0 : index
      %30 = vector.load %arg9[%c0_23, %c0_24] : memref<16x128xf32, #tpu.memory_space<vmem>>, vector<16x128xf32>
      tpu.vector_store %arg9[%c0_23, %c0_24], %29 {strides = array<i32>} : memref<16x128xf32, #tpu.memory_space<vmem>>, vector<16x128xf32>,
    } else {
    }
    return
  }
  func.func @transform_0(%arg0: i32, %arg1: i32) -> (i32, i32) {
    %c0_i32 = arith.constant 0 : i32
    %c0_i32_0 = arith.constant 0 : i32
    return %arg0, %c0_i32 : i32, i32
  }
  func.func @transform_1(%arg0: i32, %arg1: i32) -> (i32, i32) {
    %c0_i32 = arith.constant 0 : i32
    %c0_i32_0 = arith.constant 0 : i32
    return %c0_i32, %arg1 : i32, i32
  }
  func.func @transform_2(%arg0: i32, %arg1: i32) -> (i32, i32) {
    %c0_i32 = arith.constant 0 : i32
    %c0_i32_0 = arith.constant 0 : i32
    return %c0_i32, %arg1 : i32, i32
  }
  func.func @transform_3(%arg0: i32, %arg1: i32) -> (i32, i32) {
    %c0_i32 = arith.constant 0 : i32
    %c0_i32_0 = arith.constant 0 : i32
    return %c0_i32, %arg1 : i32, i32
  }
  func.func @transform_4(%arg0: i32, %arg1: i32) -> (i32, i32) {
    %c0_i32 = arith.constant 0 : i32
    %c0_i32_0 = arith.constant 0 : i32
    return %c0_i32, %arg1 : i32, i32
  }
  func.func @transform_5(%arg0: i32, %arg1: i32) -> (i32, i32) {
    %c0_i32 = arith.constant 0 : i32
    %c0_i32_0 = arith.constant 0 : i32
    return %arg1, %c0_i32 : i32, i32
  }
  func.func @transform_6(%arg0: i32, %arg1: i32) -> (i32, i32) {
    %c0_i32 = arith.constant 0 : i32
    %c0_i32_0 = arith.constant 0 : i32
    %c0_i32_1 = arith.constant 0 : i32
    return %c0_i32, %c0_i32_0 : i32, i32
  }
  func.func @transform_7(%arg0: i32, %arg1: i32) -> (i32, i32) {
    %c0_i32 = arith.constant 0 : i32
    %c0_i32_0 = arith.constant 0 : i32
    return %arg0, %c0_i32 : i32, i32
  }
}

</mosaic_0001>

<llo_original>
// kernel: tpu_custom_call.1
$region0: #{tpu_custom_call.1}
  #allocation0 [shape = 'u32[]', space=smem, size = 0x4, offset = 0x4, fixed_abs, tag = 'smem constant byte address 0x4 - core index']
  #allocation1 [shape = 'u32[72,128]{1,0:T(1,128)}', space=vmem, size = 0x9000, scoped, tag = 'internal scratch']
  #allocation2 [shape = 'f32[16,128]{1,0:T(8,128)}', space=vmem, size = 0x2000, scoped, tag = 'scratch operand']
  %s0 = inlined_call_operand.hbm [shape: bf16[16,128], index: 0, kind: input, shape index: {}]
  %s1 = inlined_call_operand.hbm [shape: bf16[128,128], index: 1, kind: input, shape index: {}]
  %s2 = inlined_call_operand.hbm [shape: bf16[128,128], index: 2, kind: input, shape index: {}]
  %s3 = inlined_call_operand.vmem [shape: f32[1,128], index: 3, kind: input, shape index: {}]
  %s4 = inlined_call_operand.vmem [shape: f32[1,128], index: 4, kind: input, shape index: {}]
  %s5 = inlined_call_operand.hbm [shape: bf16[128,128], index: 5, kind: input, shape index: {}]
  %s6 = inlined_call_operand.vmem [shape: f32[1,128], index: 6, kind: input, shape index: {}]
  %s7 = inlined_call_operand.hbm [shape: f32[16,128], index: 7, kind: output, shape index: {}]
  %s8 = sld [smem:[#allocation0]]
  $region62: #{tpu_custom_call.1} parent=0
    _
  %s10 = ssub.s32 1, %s8
  %s11 = scalar_select 0, %s10, %s8
  $region1: #{tpu_custom_call.1} parent=0
    #allocation3 [shape = 'u8[4096]{0}', space=vmem, size = 0x1000, scoped, tag = 'input window, operand 0, single buffered']
    #allocation4 [shape = 's32[1]{0}', space=sflag, size = 0x4, scoped, tag = 'scoped memory for tpu_custom_call.1']
    #allocation5 [shape = 's32[1]{0}', space=sflag, size = 0x4, scoped, tag = 'scoped memory for tpu_custom_call.1']
    #allocation6 [shape = 'u8[32768]{0}', space=vmem, size = 0x8000, scoped, tag = 'input window, operand 1, single buffered']
    #allocation7 [shape = 's32[1]{0}', space=sflag, size = 0x4, scoped, tag = 'scoped memory for tpu_custom_call.1']
    #allocation8 [shape = 'u8[32768]{0}', space=vmem, size = 0x8000, scoped, tag = 'input window, operand 2, single buffered']
    #allocation9 [shape = 'u8[32768]{0}', space=vmem, size = 0x8000, scoped, tag = 'input window, operand 5, single buffered']
    #allocation10 [shape = 's32[1]{0}', space=sflag, size = 0x4, scoped, tag = 'scoped memory for tpu_custom_call.1']
    #allocation11 [shape = 'u8[8192]{0}', space=vmem, size = 0x2000, scoped, tag = 'output window, operand 0, single buffered']
    %12 = vsyncpa [#allocation4], 0
    %13 = vsyncpa [#allocation7], 0
    %14 = vsyncpa [#allocation10], 0
    %15 = vsyncpa [#allocation5], 0
    // Predicated region
    $region2: #{tpu_custom_call.1} parent=1 // pred_check
      _
    $region3: #{tpu_custom_call.1} parent=1 // pred_check_branch
      %17 = sbr.rel (0) target = $region5
    $region4: #{tpu_custom_call.1} parent=1 // pred_region
      %19 = vsyncadd [#allocation4], 0
      %s20 = sshll.u32 %s0, 4
      %s21 = int_to_ptr.hbm [resolvable:$true] %s20
      %s22 = sshll.u32 [#allocation3], 4
      %s23 = int_to_ptr.vmem [resolvable:$true] %s22
      %28 = dma.hbm_to_vmem [thread:$0]  %s21, 128, %s23, [#allocation4], 64, 64, 4
    $region5: #{tpu_custom_call.1} parent=1 // pred_fallthru
      _
    // Predicated region
    $region6: #{tpu_custom_call.1} parent=1 // pred_check
      _
    $region7: #{tpu_custom_call.1} parent=1 // pred_check_branch
      %30 = sbr.rel (0) target = $region9
    $region8: #{tpu_custom_call.1} parent=1 // pred_region
      %32 = vsyncadd [#allocation7], 0
      %s33 = sshll.u32 %s1, 4
      %s34 = int_to_ptr.hbm [resolvable:$true] %s33
      %s35 = sshll.u32 [#allocation6], 4
      %s36 = int_to_ptr.vmem [resolvable:$true] %s35
      %41 = dma.hbm_to_vmem [thread:$0]  %s34, 1024, %s36, [#allocation7], 64, 64, 4
    $region9: #{tpu_custom_call.1} parent=1 // pred_fallthru
      _
    // Predicated region
    $region10: #{tpu_custom_call.1} parent=1 // pred_check
      _
    $region11: #{tpu_custom_call.1} parent=1 // pred_check_branch
      %43 = sbr.rel (0) target = $region13
    $region12: #{tpu_custom_call.1} parent=1 // pred_region
      %45 = vsyncadd [#allocation7], 0
      %s46 = sshll.u32 %s2, 4
      %s47 = int_to_ptr.hbm [resolvable:$true] %s46
      %s48 = sshll.u32 [#allocation8], 4
      %s49 = int_to_ptr.vmem [resolvable:$true] %s48
      %54 = dma.hbm_to_vmem [thread:$0]  %s47, 1024, %s49, [#allocation7], 64, 64, 4
    $region13: #{tpu_custom_call.1} parent=1 // pred_fallthru
      _
    // Predicated region
    $region14: #{tpu_custom_call.1} parent=1 // pred_check
      _
    $region15: #{tpu_custom_call.1} parent=1 // pred_check_branch
      %56 = sbr.rel (0) target = $region17
    $region16: #{tpu_custom_call.1} parent=1 // pred_region
      _
    $region17: #{tpu_custom_call.1} parent=1 // pred_fallthru
      _
    // Predicated region
    $region18: #{tpu_custom_call.1} parent=1 // pred_check
      _
    $region19: #{tpu_custom_call.1} parent=1 // pred_check_branch
      %58 = sbr.rel (0) target = $region21
    $region20: #{tpu_custom_call.1} parent=1 // pred_region
      _
    $region21: #{tpu_custom_call.1} parent=1 // pred_fallthru
      _
    // Predicated region
    $region22: #{tpu_custom_call.1} parent=1 // pred_check
      _
    $region23: #{tpu_custom_call.1} parent=1 // pred_check_branch
      %60 = sbr.rel (0) target = $region25
    $region24: #{tpu_custom_call.1} parent=1 // pred_region
      %62 = vsyncadd [#allocation10], 0
      %s63 = sshll.u32 %s5, 4
      %s64 = int_to_ptr.hbm [resolvable:$true] %s63
      %s65 = sshll.u32 [#allocation9], 4
      %s66 = int_to_ptr.vmem [resolvable:$true] %s65
      %71 = dma.hbm_to_vmem [thread:$0]  %s64, 1024, %s66, [#allocation10], 64, 64, 4
    $region25: #{tpu_custom_call.1} parent=1 // pred_fallthru
      _
    // Predicated region
    $region26: #{tpu_custom_call.1} parent=1 // pred_check
      _
    $region27: #{tpu_custom_call.1} parent=1 // pred_check_branch
      %73 = sbr.rel (0) target = $region29
    $region28: #{tpu_custom_call.1} parent=1 // pred_region
      _
    $region29: #{tpu_custom_call.1} parent=1 // pred_fallthru
      _
    // Predicated region
    $region30: #{tpu_custom_call.1} parent=1 // pred_check
      _
    $region31: #{tpu_custom_call.1} parent=1 // pred_check_branch
      %75 = sbr.rel (0) target = $region33
    $region32: #{tpu_custom_call.1} parent=1 // pred_region
      %77 = dma.done [#allocation4], 128
    $region33: #{tpu_custom_call.1} parent=1 // pred_fallthru
      _
    // Predicated region
    $region34: #{tpu_custom_call.1} parent=1 // pred_check
      _
    $region35: #{tpu_custom_call.1} parent=1 // pred_check_branch
      %79 = sbr.rel (0) target = $region37
    $region36: #{tpu_custom_call.1} parent=1 // pred_region
      %81 = dma.done [#allocation7], 1024
    $region37: #{tpu_custom_call.1} parent=1 // pred_fallthru
      _
    // Predicated region
    $region38: #{tpu_custom_call.1} parent=1 // pred_check
      _
    $region39: #{tpu_custom_call.1} parent=1 // pred_check_branch
      %83 = sbr.rel (0) target = $region41
    $region40: #{tpu_custom_call.1} parent=1 // pred_region
      %85 = dma.done [#allocation7], 1024
    $region41: #{tpu_custom_call.1} parent=1 // pred_fallthru
      _
    // Predicated region
    $region42: #{tpu_custom_call.1} parent=1 // pred_check
      _
    $region43: #{tpu_custom_call.1} parent=1 // pred_check_branch
      %87 = sbr.rel (0) target = $region45
    $region44: #{tpu_custom_call.1} parent=1 // pred_region
      %89 = dma.done [#allocation10], 1024
    $region45: #{tpu_custom_call.1} parent=1 // pred_fallthru
      _
    %p90 = scmp.eq.s32.totalorder 0, 0
    // Predicated region
    $region46: #{tpu_custom_call.1} parent=1 // pred_check
      %p91 = pneg %p90
    $region47: #{tpu_custom_call.1} parent=1 // pred_check_branch
      %93 = sbr.rel (%p91) target = $region49
    $region48: #{tpu_custom_call.1} parent=1 // pred_region
      %v94 = vld [vmem:[%s6] sm:$0x1]
      %v96 = vperm.slane %v94, 0
      %98 = vst [vmem:[#allocation2] sm:$0xff] %v96
      %99 = vst [vmem:[#allocation2 + $0x8] sm:$0xff] %v96
    $region49: #{tpu_custom_call.1} parent=1 // pred_fallthru
      _
    %v100 = vld [vmem:[#allocation3] sm:$0xf]
    %v101 = vld [vmem:[#allocation3 + $0x4] sm:$0xf]
    %v102 = vld [vmem:[#allocation6] sm:$0xf]
    %v103 = vld [vmem:[#allocation6 + $0x4] sm:$0xf]
    %v104 = vld [vmem:[#allocation6 + $0x8] sm:$0xf]
    %v105 = vld [vmem:[#allocation6 + $0xc] sm:$0xf]
    %v106 = vld [vmem:[#allocation6 + $0x10] sm:$0xf]
    %v107 = vld [vmem:[#allocation6 + $0x14] sm:$0xf]
    %v108 = vld [vmem:[#allocation6 + $0x18] sm:$0xf]
    %v109 = vld [vmem:[#allocation6 + $0x1c] sm:$0xf]
    %v110 = vld [vmem:[#allocation6 + $0x20] sm:$0xf]
    %v111 = vld [vmem:[#allocation6 + $0x24] sm:$0xf]
    %v112 = vld [vmem:[#allocation6 + $0x28] sm:$0xf]
    %v113 = vld [vmem:[#allocation6 + $0x2c] sm:$0xf]
    %v114 = vld [vmem:[#allocation6 + $0x30] sm:$0xf]
    %v115 = vld [vmem:[#allocation6 + $0x34] sm:$0xf]
    %v116 = vld [vmem:[#allocation6 + $0x38] sm:$0xf]
    %v117 = vld [vmem:[#allocation6 + $0x3c] sm:$0xf]
    %v118 = vld [vmem:[%s3] sm:$0x1]
    %v120 = vperm.slane %v118, 0
    %v124 = vunpack.c.l.b16 %v100
    %v125 = vunpack.c.l.b16 %v101
    %v126 = vpack.c.b16 %v125, %v124
    %v144 = vunpack.c.l.b16 %v102
    %v145 = vunpack.c.l.b16 %v103
    %v146 = vunpack.c.l.b16 %v104
    %v147 = vunpack.c.l.b16 %v105
    %v148 = vunpack.c.l.b16 %v106
    %v149 = vunpack.c.l.b16 %v107
    %v150 = vunpack.c.l.b16 %v108
    %v151 = vunpack.c.l.b16 %v109
    %v152 = vunpack.c.l.b16 %v110
    %v153 = vunpack.c.l.b16 %v111
    %v154 = vunpack.c.l.b16 %v112
    %v155 = vunpack.c.l.b16 %v113
    %v156 = vunpack.c.l.b16 %v114
    %v157 = vunpack.c.l.b16 %v115
    %v158 = vunpack.c.l.b16 %v116
    %v159 = vunpack.c.l.b16 %v117
    %v160 = vpack.c.b16 %v145, %v144
    %v161 = vpack.c.b16 %v147, %v146
    %v162 = vpack.c.b16 %v149, %v148
    %v163 = vpack.c.b16 %v151, %v150
    %v164 = vpack.c.b16 %v153, %v152
    %v165 = vpack.c.b16 %v155, %v154
    %v166 = vpack.c.b16 %v157, %v156
    %v167 = vpack.c.b16 %v159, %v158
    %176 = vmatpush.bf16.msra.mxu0 %v167
    %177 = vmatpush.bf16.msra.mxu0 %v166
    %178 = vmatpush.bf16.msra.mxu0 %v165
    %179 = vmatpush.bf16.msra.mxu0 %v164
    %180 = vmatpush.bf16.msra.mxu0 %v163
    %181 = vmatpush.bf16.msra.mxu0 %v162
    %182 = vmatpush.bf16.msra.mxu0 %v161
    %183 = vmatpush.bf16.msra.mxu0 %v160
    %184 = vmatmul.bf16.gmra.mxu0 %v126
    %v185 = vpop.f32.mrf.mxu0
    %v186 = vadd.f32 %v120, %v185
    %v187 = vpop.f32.mrf.mxu0
    %v188 = vadd.f32 %v120, %v187
    %189 = vdwg.mxu0
    %v190 = vld [vmem:[#allocation8] sm:$0xf]
    %v191 = vld [vmem:[#allocation8 + $0x4] sm:$0xf]
    %v192 = vld [vmem:[#allocation8 + $0x8] sm:$0xf]
    %v193 = vld [vmem:[#allocation8 + $0xc] sm:$0xf]
    %v194 = vld [vmem:[#allocation8 + $0x10] sm:$0xf]
    %v195 = vld [vmem:[#allocation8 + $0x14] sm:$0xf]
    %v196 = vld [vmem:[#allocation8 + $0x18] sm:$0xf]
    %v197 = vld [vmem:[#allocation8 + $0x1c] sm:$0xf]
    %v198 = vld [vmem:[#allocation8 + $0x20] sm:$0xf]
    %v199 = vld [vmem:[#allocation8 + $0x24] sm:$0xf]
    %v200 = vld [vmem:[#allocation8 + $0x28] sm:$0xf]
    %v201 = vld [vmem:[#allocation8 + $0x2c] sm:$0xf]
    %v202 = vld [vmem:[#allocation8 + $0x30] sm:$0xf]
    %v203 = vld [vmem:[#allocation8 + $0x34] sm:$0xf]
    %v204 = vld [vmem:[#allocation8 + $0x38] sm:$0xf]
    %v205 = vld [vmem:[#allocation8 + $0x3c] sm:$0xf]
    %v206 = vld [vmem:[%s4] sm:$0x1]
    %v208 = vperm.slane %v206, 0
    %v226 = vunpack.c.l.b16 %v190
    %v227 = vunpack.c.l.b16 %v191
    %v228 = vunpack.c.l.b16 %v192
    %v229 = vunpack.c.l.b16 %v193
    %v230 = vunpack.c.l.b16 %v194
    %v231 = vunpack.c.l.b16 %v195
    %v232 = vunpack.c.l.b16 %v196
    %v233 = vunpack.c.l.b16 %v197
    %v234 = vunpack.c.l.b16 %v198
    %v235 = vunpack.c.l.b16 %v199
    %v236 = vunpack.c.l.b16 %v200
    %v237 = vunpack.c.l.b16 %v201
    %v238 = vunpack.c.l.b16 %v202
    %v239 = vunpack.c.l.b16 %v203
    %v240 = vunpack.c.l.b16 %v204
    %v241 = vunpack.c.l.b16 %v205
    %v242 = vpack.c.b16 %v227, %v226
    %v243 = vpack.c.b16 %v229, %v228
    %v244 = vpack.c.b16 %v231, %v230
    %v245 = vpack.c.b16 %v233, %v232
    %v246 = vpack.c.b16 %v235, %v234
    %v247 = vpack.c.b16 %v237, %v236
    %v248 = vpack.c.b16 %v239, %v238
    %v249 = vpack.c.b16 %v241, %v240
    %258 = vmatpush.bf16.msra.mxu0 %v249
    %259 = vmatpush.bf16.msra.mxu0 %v248
    %260 = vmatpush.bf16.msra.mxu0 %v247
    %261 = vmatpush.bf16.msra.mxu0 %v246
    %262 = vmatpush.bf16.msra.mxu0 %v245
    %263 = vmatpush.bf16.msra.mxu0 %v244
    %264 = vmatpush.bf16.msra.mxu0 %v243
    %265 = vmatpush.bf16.msra.mxu0 %v242
    %266 = vmatmul.bf16.gmra.mxu0 %v126
    %v267 = vpop.f32.mrf.mxu0
    %v268 = vadd.f32 %v208, %v267
    %v269 = vpop.f32.mrf.mxu0
    %v270 = vadd.f32 %v208, %v269
    %271 = vdwg.mxu0
    %v272 = vxor.u32 %v268, 2147483648
    %v273 = vxor.u32 %v270, 2147483648
    %v274 = vmul.f32 %v272, 1.442695
    %v275 = vpow.pop %v274
    %v276 = vmul.f32 %v273, 1.442695
    %v277 = vpow.pop %v276
    %v278 = vadd.f32 %v275, 1.0
    %v279 = vadd.f32 %v277, 1.0
    %v280 = vrcp.pop %v278
    %v281 = vmul.f32 %v278, %v280
    %v282 = vsub.f32 1.0, %v281
    %v283 = vmul.f32 %v280, %v282
    %v284 = vadd.f32 %v280, %v283
    %vm285 = vweird.f32 %v278
    %vm286 = vweird.f32 %v280
    %vm287 = vmor %vm285, %vm286
    %v288 = vsel %vm287, %v280, %v284
    %v289 = vand.u32 2147483647, %v278
    %vm290 = vcmp.eq.f32.partialorder %v289, 8.507059e+37
    %v291 = vand.u32 %v278, 2147483648
    %v292 = vor.u32 1.1754944e-38, %v291
    %v293 = vsel %vm290, %v292, %v288
    %v294 = vmul.f32 1.0, %v293
    %v295 = vrcp.pop %v279
    %v296 = vmul.f32 %v279, %v295
    %v297 = vsub.f32 1.0, %v296
    %v298 = vmul.f32 %v295, %v297
    %v299 = vadd.f32 %v295, %v298
    %vm300 = vweird.f32 %v279
    %vm301 = vweird.f32 %v295
    %vm302 = vmor %vm300, %vm301
    %v303 = vsel %vm302, %v295, %v299
    %v304 = vand.u32 2147483647, %v279
    %vm305 = vcmp.eq.f32.partialorder %v304, 8.507059e+37
    %v306 = vand.u32 %v279, 2147483648
    %v307 = vor.u32 1.1754944e-38, %v306
    %v308 = vsel %vm305, %v307, %v303
    %v309 = vmul.f32 1.0, %v308
    %v310 = vmul.f32 %v186, %v294
    %v311 = vmul.f32 %v188, %v309
    %v312 = vld [vmem:[#allocation2] sm:$0xff]
    %v313 = vld [vmem:[#allocation2 + $0x8] sm:$0xff]
    %v314 = vpack.c.bf16 %v311, %v310
    %v315 = vld [vmem:[#allocation9] sm:$0xf]
    %v316 = vld [vmem:[#allocation9 + $0x4] sm:$0xf]
    %v317 = vld [vmem:[#allocation9 + $0x8] sm:$0xf]
    %v318 = vld [vmem:[#allocation9 + $0xc] sm:$0xf]
    %v319 = vld [vmem:[#allocation9 + $0x10] sm:$0xf]
    %v320 = vld [vmem:[#allocation9 + $0x14] sm:$0xf]
    %v321 = vld [vmem:[#allocation9 + $0x18] sm:$0xf]
    %v322 = vld [vmem:[#allocation9 + $0x1c] sm:$0xf]
    %v323 = vld [vmem:[#allocation9 + $0x20] sm:$0xf]
    %v324 = vld [vmem:[#allocation9 + $0x24] sm:$0xf]
    %v325 = vld [vmem:[#allocation9 + $0x28] sm:$0xf]
    %v326 = vld [vmem:[#allocation9 + $0x2c] sm:$0xf]
    %v327 = vld [vmem:[#allocation9 + $0x30] sm:$0xf]
    %v328 = vld [vmem:[#allocation9 + $0x34] sm:$0xf]
    %v329 = vld [vmem:[#allocation9 + $0x38] sm:$0xf]
    %v330 = vld [vmem:[#allocation9 + $0x3c] sm:$0xf]
    %v347 = vunpack.c.l.b16 %v315
    %v348 = vunpack.c.l.b16 %v316
    %v349 = vunpack.c.l.b16 %v317
    %v350 = vunpack.c.l.b16 %v318
    %v351 = vunpack.c.l.b16 %v319
    %v352 = vunpack.c.l.b16 %v320
    %v353 = vunpack.c.l.b16 %v321
    %v354 = vunpack.c.l.b16 %v322
    %v355 = vunpack.c.l.b16 %v323
    %v356 = vunpack.c.l.b16 %v324
    %v357 = vunpack.c.l.b16 %v325
    %v358 = vunpack.c.l.b16 %v326
    %v359 = vunpack.c.l.b16 %v327
    %v360 = vunpack.c.l.b16 %v328
    %v361 = vunpack.c.l.b16 %v329
    %v362 = vunpack.c.l.b16 %v330
    %v363 = vpack.c.b16 %v348, %v347
    %v364 = vpack.c.b16 %v350, %v349
    %v365 = vpack.c.b16 %v352, %v351
    %v366 = vpack.c.b16 %v354, %v353
    %v367 = vpack.c.b16 %v356, %v355
    %v368 = vpack.c.b16 %v358, %v357
    %v369 = vpack.c.b16 %v360, %v359
    %v370 = vpack.c.b16 %v362, %v361
    %379 = vmatpush.bf16.msra.mxu0 %v370
    %380 = vmatpush.bf16.msra.mxu0 %v369
    %381 = vmatpush.bf16.msra.mxu0 %v368
    %382 = vmatpush.bf16.msra.mxu0 %v367
    %383 = vmatpush.bf16.msra.mxu0 %v366
    %384 = vmatpush.bf16.msra.mxu0 %v365
    %385 = vmatpush.bf16.msra.mxu0 %v364
    %386 = vmatpush.bf16.msra.mxu0 %v363
    %387 = vmatmul.bf16.gmra.mxu0 %v314
    %v388 = vpop.f32.mrf.mxu0
    %v389 = vadd.f32 0.0, %v388
    %v390 = vpop.f32.mrf.mxu0
    %v391 = vadd.f32 0.0, %v390
    %392 = vdwg.mxu0
    %v393 = vadd.f32 %v312, %v389
    %v394 = vadd.f32 %v313, %v391
    %395 = vst [vmem:[#allocation2] sm:$0xff] %v393
    %396 = vst [vmem:[#allocation2 + $0x8] sm:$0xff] %v394
    // Predicated region
    $region50: #{tpu_custom_call.1} parent=1 // pred_check
      %p397 = pneg %p90
    $region51: #{tpu_custom_call.1} parent=1 // pred_check_branch
      %399 = sbr.rel (%p397) target = $region53
    $region52: #{tpu_custom_call.1} parent=1 // pred_region
      %v400 = vld [vmem:[#allocation2] sm:$0xff]
      %v401 = vld [vmem:[#allocation2 + $0x8] sm:$0xff]
      %402 = vst [vmem:[#allocation11] sm:$0xff] %v400
      %403 = vst [vmem:[#allocation11 + $0x8] sm:$0xff] %v401
    $region53: #{tpu_custom_call.1} parent=1 // pred_fallthru
      _
    // Predicated region
    $region54: #{tpu_custom_call.1} parent=1 // pred_check
      _
    $region55: #{tpu_custom_call.1} parent=1 // pred_check_branch
      %405 = sbr.rel (0) target = $region57
    $region56: #{tpu_custom_call.1} parent=1 // pred_region
      %407 = vsyncadd [#allocation5], 0
      %s408 = sshll.u32 [#allocation11], 4
      %s409 = int_to_ptr.vmem [resolvable:$true] %s408
      %s410 = sshll.u32 %s7, 4
      %s411 = int_to_ptr.hbm [resolvable:$true] %s410
      %416 = dma.vmem_to_hbm [thread:$0]  %s409, 256, %s411, [#allocation5], 128, 128, 8
    $region57: #{tpu_custom_call.1} parent=1 // pred_fallthru
      _
    // Predicated region
    $region58: #{tpu_custom_call.1} parent=1 // pred_check
      _
    $region59: #{tpu_custom_call.1} parent=1 // pred_check_branch
      %418 = sbr.rel (0) target = $region61
    $region60: #{tpu_custom_call.1} parent=1 // pred_region
      %420 = dma.done [#allocation5], 256
    $region61: #{tpu_custom_call.1} parent=1 // pred_fallthru
      _
    %421 = vsyncpa [#allocation4], 1
    %422 = vsyncpa [#allocation7], 1
    %423 = vsyncpa [#allocation10], 1
    %424 = vsyncpa [#allocation5], 1

</llo_original>
